<compile_context>
chip_gen: v5e
topology: v5e:2x2
jax: 0.10.0
libtpu: 0.0.40
codegen_flags: <defaults>
</compile_context>

<pallas_src>
import jax
import jax.numpy as jnp
from jax.experimental import pallas as pl
from jax.experimental.pallas import tpu as pltpu

LANES = 128
_TARGET_BLOCK_BYTES = 2 << 20  # ~2 MiB input tile (x2 for out, x2 double-buffer)


def _stochastic_depth_kernel(scale_ref, x_ref, o_ref):
    """scale_ref: (BT, 1, 1) per-sample scale (0 or 1/survival), x.dtype.
    x_ref / o_ref: (BT, TR, 128) tiles of the flattened samples."""
    o_ref[...] = (x_ref[...] * scale_ref[...]).astype(o_ref.dtype)


def stochastic_depth(x, seed, prob, mode="row", training=True):
    """Pallas StochasticDepth forward; matches the PyTorch module semantics."""
    if prob == 0.0 or not training:
        return x
    if prob >= 1.0:
        # survival == 0: every sample is dropped (guards the 0 * inf NaN).
        return jnp.zeros_like(x)

    survival = 1.0 - float(prob)
    n = x.shape[0]
    d = 1
    for s in x.shape[1:]:
        d *= s

    # --- per-sample keep / scale (Bernoulli(survival) / survival), in wrapper ---
    key = jax.random.PRNGKey(seed)
    if mode == "row":
        keep = jax.random.bernoulli(key, p=survival, shape=(n,))
    else:  # "all": one decision shared by every sample
        keep = jnp.broadcast_to(
            jax.random.bernoulli(key, p=survival, shape=(1,)), (n,)
        )
    scale = jnp.where(keep, 1.0 / survival, 0.0).astype(x.dtype).reshape(n, 1, 1)

    # --- lane-dense (n, rows, 128) view; pad only when strictly needed ---
    rows = pl.cdiv(d, LANES)
    pad = rows * LANES - d
    xf = x.reshape(n, d)
    if pad:
        xf = jnp.pad(xf, ((0, 0), (0, pad)))
    xf = xf.reshape(n, rows, LANES)

    # --- tiling: pack small samples per block, tile rows of large samples ---
    itemsize = x.dtype.itemsize
    row_bytes = LANES * itemsize
    sample_bytes = rows * row_bytes
    if sample_bytes >= _TARGET_BLOCK_BYTES:
        # Large sample: one sample per block, tile its rows in ~2 MiB chunks
        # (rounded to a multiple of 8 sublanes).
        bt = 1
        tr = max(8, min(rows, (_TARGET_BLOCK_BYTES // row_bytes) // 8 * 8))
    else:
        # Small samples: take all rows and pack several samples per block.
        tr = rows
        bt = max(1, min(n, _TARGET_BLOCK_BYTES // max(sample_bytes, 1)))

    grid = (pl.cdiv(n, bt), pl.cdiv(rows, tr))

    out = pl.pallas_call(
        _stochastic_depth_kernel,
        out_shape=jax.ShapeDtypeStruct(xf.shape, x.dtype),
        grid=grid,
        in_specs=[
            pl.BlockSpec((bt, 1, 1), lambda bi, ri: (bi, 0, 0)),
            pl.BlockSpec((bt, tr, LANES), lambda bi, ri: (bi, ri, 0)),
        ],
        out_specs=pl.BlockSpec((bt, tr, LANES), lambda bi, ri: (bi, ri, 0)),
        compiler_params=pltpu.CompilerParams(
            dimension_semantics=("parallel", "parallel")
        ),
        cost_estimate=pl.CostEstimate(
            flops=n * rows * LANES,
            transcendentals=0,
            bytes_accessed=2 * n * rows * LANES * itemsize,
        ),
    )(scale, xf)

    out = out.reshape(n, rows * LANES)
    if pad:
        out = out[:, :d]
    return out.reshape(x.shape)


if __name__ == "__main__":
    key = jax.random.PRNGKey(0)
    x = jax.random.normal(key, (2, 4, 16, 16), dtype=jnp.float32)  # NCHW

    prob = 0.5
    survival = 1.0 - prob
    ok = True

    # "row": each sample is independently dropped (all zeros) or scaled by 1/survival
    y = jax.block_until_ready(
        stochastic_depth(x, seed=1234, prob=prob, mode="row", training=True)
    )
    for b in range(x.shape[0]):
        dropped = bool(jnp.all(y[b] == 0.0))
        scaled = bool(jnp.allclose(y[b], x[b] / survival, rtol=1e-5, atol=1e-5))
        ok = ok and (dropped or scaled)

    # "all": one decision for the whole tensor
    y_all = jax.block_until_ready(
        stochastic_depth(x, seed=7, prob=prob, mode="all", training=True)
    )
    dropped_all = bool(jnp.all(y_all == 0.0))
    scaled_all = bool(jnp.allclose(y_all, x / survival, rtol=1e-5, atol=1e-5))
    ok = ok and (dropped_all or scaled_all)

    # eval / prob == 0 returns x unchanged; prob == 1 drops everything (no NaN)
    y_eval = jax.block_until_ready(
        stochastic_depth(x, seed=1234, prob=prob, mode="row", training=False)
    )
    ok = ok and bool(jnp.array_equal(y_eval, x))
    y_zero = jax.block_until_ready(
        stochastic_depth(x, seed=1234, prob=1.0, mode="row", training=True)
    )
    ok = ok and bool(jnp.all(y_zero == 0.0))

    # non-multiple-of-128 feature size exercises the pad/slice path
    x_odd = jax.random.normal(jax.random.PRNGKey(1), (2, 3, 7, 5), jnp.float32)
    y_odd = jax.block_until_ready(
        stochastic_depth(x_odd, seed=42, prob=prob, mode="row", training=True)
    )
    for b in range(x_odd.shape[0]):
        dropped = bool(jnp.all(y_odd[b] == 0.0))
        scaled = bool(
            jnp.allclose(y_odd[b], x_odd[b] / survival, rtol=1e-5, atol=1e-5)
        )
        ok = ok and (dropped or scaled)

    print("KERNEL_OK" if ok else "KERNEL_MISMATCH")
</pallas_src>

<mosaic_0001>
module attributes {stable_mosaic.version = 11 : i64} {
  func.func @_stochastic_depth_kernel(%arg0: i32, %arg1: i32, %arg2: memref<2x1x1xf32, #tpu.memory_space<vmem>>, %arg3: memref<2x8x128xf32, #tpu.memory_space<vmem>>, %arg4: memref<2x8x128xf32, #tpu.memory_space<vmem>>) attributes {dimension_semantics = [#tpu.dimension_semantics<parallel>, #tpu.dimension_semantics<parallel>], iteration_bounds = array<i64: 1, 1>, scalar_prefetch = 0 : i64, scratch_operands = 0 : i64, tpu.core_type = #tpu.core_type<tc>, window_params = [{transform_indices = @transform_0, window_bounds = array<i64: 2, 1, 1>}, {transform_indices = @transform_1, window_bounds = array<i64: 2, 8, 128>}, {transform_indices = @transform_2, window_bounds = array<i64: 2, 8, 128>}]} {
    %c0 = arith.constant 0 : index
    %c0_0 = arith.constant 0 : index
    %c0_1 = arith.constant 0 : index
    %0 = vector.load %arg3[%c0, %c0_0, %c0_1] : memref<2x8x128xf32, #tpu.memory_space<vmem>>, vector<2x8x128xf32>
    %c0_2 = arith.constant 0 : index
    %c0_3 = arith.constant 0 : index
    %c0_4 = arith.constant 0 : index
    %1 = vector.load %arg2[%c0_2, %c0_3, %c0_4] : memref<2x1x1xf32, #tpu.memory_space<vmem>>, vector<2x1x1xf32>
    %2 = vector.broadcast %1 : vector<2x1x1xf32> to vector<2x8x128xf32>
    %3 = arith.mulf %0, %2 : vector<2x8x128xf32>
    %c0_5 = arith.constant 0 : index
    %c0_6 = arith.constant 0 : index
    %c0_7 = arith.constant 0 : index
    %4 = vector.load %arg4[%c0_5, %c0_6, %c0_7] : memref<2x8x128xf32, #tpu.memory_space<vmem>>, vector<2x8x128xf32>
    tpu.vector_store %arg4[%c0_5, %c0_6, %c0_7], %3 {strides = array<i32>} : memref<2x8x128xf32, #tpu.memory_space<vmem>>, vector<2x8x128xf32>,
    return
  }
  func.func @transform_0(%arg0: i32, %arg1: i32) -> (i32, i32, i32) {
    %c0_i32 = arith.constant 0 : i32
    %c0_i32_0 = arith.constant 0 : i32
    %c0_i32_1 = arith.constant 0 : i32
    return %arg0, %c0_i32, %c0_i32_0 : i32, i32, i32
  }
  func.func @transform_1(%arg0: i32, %arg1: i32) -> (i32, i32, i32) {
    %c0_i32 = arith.constant 0 : i32
    %c0_i32_0 = arith.constant 0 : i32
    return %arg0, %arg1, %c0_i32 : i32, i32, i32
  }
  func.func @transform_2(%arg0: i32, %arg1: i32) -> (i32, i32, i32) {
    %c0_i32 = arith.constant 0 : i32
    %c0_i32_0 = arith.constant 0 : i32
    return %arg0, %arg1, %c0_i32 : i32, i32, i32
  }
}

</mosaic_0001>

<llo_original>
// kernel: tpu_custom_call.1
$region0: #{tpu_custom_call.1}
  #allocation0 [shape = 'u32[]', space=smem, size = 0x4, offset = 0x4, fixed_abs, tag = 'smem constant byte address 0x4 - core index']
  #allocation1 [shape = 'u32[72,128]{1,0:T(1,128)}', space=vmem, size = 0x9000, scoped, tag = 'internal scratch']
  %s0 = inlined_call_operand.vmem [shape: f32[2,1,1], index: 0, kind: input, shape index: {}]
  %s1 = inlined_call_operand.hbm [shape: f32[2,8,128], index: 1, kind: input, shape index: {}]
  %s2 = inlined_call_operand.hbm [shape: f32[2,8,128], index: 2, kind: output, shape index: {}]
  %s3 = sld [smem:[#allocation0]]
  $region22: #{tpu_custom_call.1} parent=0
    _
  %s5 = ssub.s32 1, %s3
  %s6 = scalar_select 0, %s5, %s3
  $region1: #{tpu_custom_call.1} parent=0
    #allocation2 [shape = 'u8[8192]{0}', space=vmem, size = 0x2000, scoped, tag = 'input window, operand 1, single buffered']
    #allocation3 [shape = 's32[1]{0}', space=sflag, size = 0x4, scoped, tag = 'scoped memory for tpu_custom_call.1']
    #allocation4 [shape = 's32[1]{0}', space=sflag, size = 0x4, scoped, tag = 'scoped memory for tpu_custom_call.1']
    #allocation5 [shape = 'u8[8192]{0}', space=vmem, size = 0x2000, scoped, tag = 'output window, operand 0, single buffered']
    %7 = vsyncpa [#allocation3], 0
    %8 = vsyncpa [#allocation4], 0
    // Predicated region
    $region2: #{tpu_custom_call.1} parent=1 // pred_check
      _
    $region3: #{tpu_custom_call.1} parent=1 // pred_check_branch
      %10 = sbr.rel (0) target = $region5
    $region4: #{tpu_custom_call.1} parent=1 // pred_region
      _
    $region5: #{tpu_custom_call.1} parent=1 // pred_fallthru
      _
    // Predicated region
    $region6: #{tpu_custom_call.1} parent=1 // pred_check
      _
    $region7: #{tpu_custom_call.1} parent=1 // pred_check_branch
      %12 = sbr.rel (0) target = $region9
    $region8: #{tpu_custom_call.1} parent=1 // pred_region
      %14 = vsyncadd [#allocation3], 0
      %s15 = sshll.u32 %s1, 4
      %s16 = int_to_ptr.hbm [resolvable:$true] %s15
      %s17 = sshll.u32 [#allocation2], 4
      %s18 = int_to_ptr.vmem [resolvable:$true] %s17
      %23 = dma.hbm_to_vmem [thread:$0]  %s16, 256, %s18, [#allocation3], 128, 128, 8
    $region9: #{tpu_custom_call.1} parent=1 // pred_fallthru
      _
    // Predicated region
    $region10: #{tpu_custom_call.1} parent=1 // pred_check
      _
    $region11: #{tpu_custom_call.1} parent=1 // pred_check_branch
      %25 = sbr.rel (0) target = $region13
    $region12: #{tpu_custom_call.1} parent=1 // pred_region
      %27 = dma.done [#allocation3], 256
    $region13: #{tpu_custom_call.1} parent=1 // pred_fallthru
      _
    %v28 = vld [vmem:[#allocation2] sm:$0xff]
    %v29 = vld [vmem:[#allocation2 + $0x8] sm:$0xff]
    %v30 = vld [vmem:[%s0] sm:$0x1]
    %v31 = vld [vmem:[%s0 + $0x1] sm:$0x1]
    %v34 = vperm.slane %v30, 0
    %v35 = vperm.slane %v31, 0
    %36 = vset.pattern.permute.xlu0 0
    %37 = vperm.xlu0 %36, %v34
    %v38 = vpop.permute.xlu0 %37
    %40 = vset.pattern.permute.xlu0 0
    %41 = vperm.xlu0 %40, %v35
    %v42 = vpop.permute.xlu0 %41
    %v44 = vmul.f32 %v28, %v38
    %v45 = vmul.f32 %v29, %v42
    %46 = vst [vmem:[#allocation5] sm:$0xff] %v44
    %47 = vst [vmem:[#allocation5 + $0x8] sm:$0xff] %v45
    // Predicated region
    $region14: #{tpu_custom_call.1} parent=1 // pred_check
      _
    $region15: #{tpu_custom_call.1} parent=1 // pred_check_branch
      %49 = sbr.rel (0) target = $region17
    $region16: #{tpu_custom_call.1} parent=1 // pred_region
      %51 = vsyncadd [#allocation4], 0
      %s52 = sshll.u32 [#allocation5], 4
      %s53 = int_to_ptr.vmem [resolvable:$true] %s52
      %s54 = sshll.u32 %s2, 4
      %s55 = int_to_ptr.hbm [resolvable:$true] %s54
      %60 = dma.vmem_to_hbm [thread:$0]  %s53, 256, %s55, [#allocation4], 128, 128, 8
    $region17: #{tpu_custom_call.1} parent=1 // pred_fallthru
      _
    // Predicated region
    $region18: #{tpu_custom_call.1} parent=1 // pred_check
      _
    $region19: #{tpu_custom_call.1} parent=1 // pred_check_branch
      %62 = sbr.rel (0) target = $region21
    $region20: #{tpu_custom_call.1} parent=1 // pred_region
      %64 = dma.done [#allocation4], 256
    $region21: #{tpu_custom_call.1} parent=1 // pred_fallthru
      _
    %65 = vsyncpa [#allocation3], 1
    %66 = vsyncpa [#allocation4], 1

</llo_original>
